<compile_context>
chip_gen: v7x
topology: tpu7x:2x2x1
jax: 0.10.0
libtpu: 0.0.40
codegen_flags: <defaults>
</compile_context>

<pallas_src>
import numpy as np
import jax
import jax.numpy as jnp
from jax.experimental import pallas as pl
from jax.experimental.pallas import tpu as pltpu


def _round_up(x, m):
    return ((x + m - 1) // m) * m


# ----------------------------------------------------------------------------
# Kernel: fused (strided conv + 1x1-conv chain) matmul + ReLU, lane-dense out
# ----------------------------------------------------------------------------
def _encoder_kernel(ft_ref, w_ref, o_ref):
    # ft_ref: (1, K_pad, F_tile)  framed input, frames on the lane axis
    # w_ref : (N, K_pad)          fused weight (all linear layers composed)
    # o_ref : (1, N, F_tile)      lane-dense output tile (PyTorch NCF layout)
    y = jnp.dot(w_ref[...], ft_ref[0], preferred_element_type=jnp.float32)
    o_ref[0] = jnp.maximum(y, 0.0).astype(o_ref.dtype)


# ----------------------------------------------------------------------------
# Wrapper
# ----------------------------------------------------------------------------
def encoder_forward(x, weights, kernel_size, stride, *, frame_tile=512, dtype=None):
    """Encoder.forward.

    x:       (B, 1, T) waveform (PyTorch NCT layout).
    weights: [w0 (out_chan, 1, K)] + optional [(out_chan, out_chan)] * (layer_num-1)
    Returns: (B, out_chan, F) with F = (T - K)//stride + 1, after ReLU.
    """
    B, cin, T = x.shape
    assert cin == 1, "Encoder expects single-channel waveform input"
    K, s = kernel_size, stride
    N = weights[0].shape[0]

    # ---- Fuse all linear layers into one (N, K) weight (exact: ReLU is last).
    w_eff = weights[0][:, 0, :]                       # (N, K)
    for wp in weights[1:]:                            # 1x1 convs: (N, N)
        w_eff = jnp.dot(wp, w_eff)                    # compose at trace time

    m = -(-K // s)                                    # ceil(K / stride)
    K_pad = m * s
    if K_pad > K:
        w_eff = jnp.pad(w_eff, ((0, 0), (0, K_pad - K)))

    # ---- Frame-axis tiling (lane axis): tiles are multiples of 128 lanes.
    F = (T - K) // s + 1
    if F <= frame_tile:
        F_tile = _round_up(F, 128)
        F_pad = F_tile
    else:
        F_tile = frame_tile
        F_pad = _round_up(F, F_tile)

    # ---- Build framed, transposed input on the host side:
    #        ft[b, r*s + q, f] = x[b, 0, (f + r) * s + q]
    #      (size ~ m * B * T, negligible vs the (B, N, F) output).
    L_need = (F_pad + m - 1) * s
    xr = x[:, 0, :]
    if L_need > T:
        xr = jnp.pad(xr, ((0, 0), (0, L_need - T)))
    else:
        xr = xr[:, :L_need]
    xc = xr.reshape(B, F_pad + m - 1, s)
    frames = jnp.concatenate([xc[:, r:r + F_pad, :] for r in range(m)], axis=2)
    ft = jnp.transpose(frames, (0, 2, 1))             # (B, K_pad, F_pad)

    if dtype is not None:                              # optional bf16 HBM traffic
        ft = ft.astype(dtype)
        w_eff = w_eff.astype(dtype)

    grid = (B, F_pad // F_tile)
    out = pl.pallas_call(
        _encoder_kernel,
        out_shape=jax.ShapeDtypeStruct((B, N, F_pad), x.dtype),
        grid=grid,
        in_specs=[
            pl.BlockSpec((1, K_pad, F_tile), lambda b, fi: (b, 0, fi)),
            pl.BlockSpec((N, K_pad), lambda b, fi: (0, 0)),
        ],
        out_specs=pl.BlockSpec((1, N, F_tile), lambda b, fi: (b, 0, fi)),
        compiler_params=pltpu.CompilerParams(
            dimension_semantics=("parallel", "parallel")),
    )(ft, w_eff)
    return out[:, :, :F]


# ----------------------------------------------------------------------------
# Parameters (mirrors Encoder.__init__, bias=False everywhere)
# ----------------------------------------------------------------------------
def init_encoder_params(key, out_chan, kernel_size, layer_num=1):
    keys = jax.random.split(key, layer_num)
    params = [0.1 * jax.random.normal(keys[0], (out_chan, 1, kernel_size), jnp.float32)]
    for i in range(layer_num - 1):
        params.append(
            0.1 * jax.random.normal(keys[i + 1], (out_chan, out_chan), jnp.float32))
    return params


# ----------------------------------------------------------------------------
# Pure-numpy reference (matches PyTorch Conv1d(stride) / Conv1d(k=1) / ReLU)
# ----------------------------------------------------------------------------
def ref_encoder(x, weights, K, s):
    x = x.astype(np.float32)
    B, _, T = x.shape
    F = (T - K) // s + 1
    w0 = weights[0][:, 0, :]                          # (N, K)
    h = np.zeros((B, w0.shape[0], F), np.float32)
    for f in range(F):
        h[:, :, f] = x[:, 0, f * s:f * s + K] @ w0.T
    for wp in weights[1:]:
        h = np.einsum("oi,bif->bof", wp, h)
    return np.maximum(h, 0.0)


if __name__ == "__main__":
    # Encoder(out_chan=64, kernel_size=16, stride=8, layer_num=2), x: [B, 1, T]
    out_chan, K, stride, layer_num = 64, 16, 8, 2
    B, T = 2, 1024

    key = jax.random.PRNGKey(0)
    kx, kp = jax.random.split(key)
    x = jax.random.normal(kx, (B, 1, T), jnp.float32)
    params = init_encoder_params(kp, out_chan, K, layer_num)

    y = encoder_forward(x, params, K, stride)
    y = jax.block_until_ready(y)

    y_ref = ref_encoder(np.asarray(x), [np.asarray(w) for w in params], K, stride)
    assert y.shape == y_ref.shape, (y.shape, y_ref.shape)
    np.testing.assert_allclose(np.asarray(y), y_ref, rtol=1e-4, atol=1e-4)
    print("KERNEL_OK")
</pallas_src>

<mosaic_0001>
module attributes {stable_mosaic.version = 11 : i64} {
  func.func @_encoder_kernel(%arg0: i32, %arg1: i32, %arg2: memref<1x16x128xf32, #tpu.memory_space<vmem>>, %arg3: memref<64x16xf32, #tpu.memory_space<vmem>>, %arg4: memref<1x64x128xf32, #tpu.memory_space<vmem>>) attributes {dimension_semantics = [#tpu.dimension_semantics<parallel>, #tpu.dimension_semantics<parallel>], iteration_bounds = array<i64: 2, 1>, scalar_prefetch = 0 : i64, scratch_operands = 0 : i64, tpu.core_type = #tpu.core_type<tc>, window_params = [{transform_indices = @transform_0, window_bounds = array<i64: 1, 16, 128>}, {pipeline_mode = #tpu.pipeline_mode<synchronous>, transform_indices = @transform_1, window_bounds = array<i64: 64, 16>}, {transform_indices = @transform_2, window_bounds = array<i64: 1, 64, 128>}]} {
    %c0 = arith.constant 0 : index
    %c0_0 = arith.constant 0 : index
    %0 = vector.load %arg3[%c0, %c0_0] : memref<64x16xf32, #tpu.memory_space<vmem>>, vector<64x16xf32>
    %c0_1 = arith.constant 0 : index
    %c0_2 = arith.constant 0 : index
    %c0_3 = arith.constant 0 : index
    %1 = vector.load %arg2[%c0_1, %c0_2, %c0_3] : memref<1x16x128xf32, #tpu.memory_space<vmem>>, vector<1x16x128xf32>
    %2 = vector.shape_cast %1 : vector<1x16x128xf32> to vector<16x128xf32>
    %cst = arith.constant dense<0.000000e+00> : vector<64x128xf32>
    %3 = tpu.matmul %0, %2, %cst {dimension_numbers = #tpu.dot_dimension_numbers<[1], [0], [0], [1], [0, 0, 1, 1], [], []>} : vector<64x16xf32>, vector<16x128xf32>, vector<64x128xf32> -> vector<64x128xf32>
    %cst_4 = arith.constant 0.000000e+00 : f32
    %4 = vector.broadcast %cst_4 : f32 to vector<64x128xf32>
    %5 = arith.maximumf %3, %4 : vector<64x128xf32>
    %c0_5 = arith.constant 0 : index
    %c0_6 = arith.constant 0 : index
    %c0_7 = arith.constant 0 : index
    %6 = vector.load %arg4[%c0_5, %c0_6, %c0_7] : memref<1x64x128xf32, #tpu.memory_space<vmem>>, vector<1x64x128xf32>
    %7 = vector.shape_cast %6 : vector<1x64x128xf32> to vector<64x128xf32>
    %8 = vector.shape_cast %5 : vector<64x128xf32> to vector<1x64x128xf32>
    tpu.vector_store %arg4[%c0_5, %c0_6, %c0_7], %8 {strides = array<i32>} : memref<1x64x128xf32, #tpu.memory_space<vmem>>, vector<1x64x128xf32>,
    return
  }
  func.func @transform_0(%arg0: i32, %arg1: i32) -> (i32, i32, i32) {
    %c0_i32 = arith.constant 0 : i32
    %c0_i32_0 = arith.constant 0 : i32
    return %arg0, %c0_i32, %arg1 : i32, i32, i32
  }
  func.func @transform_1(%arg0: i32, %arg1: i32) -> (i32, i32) {
    %c0_i32 = arith.constant 0 : i32
    %c0_i32_0 = arith.constant 0 : i32
    %c0_i32_1 = arith.constant 0 : i32
    return %c0_i32, %c0_i32_0 : i32, i32
  }
  func.func @transform_2(%arg0: i32, %arg1: i32) -> (i32, i32, i32) {
    %c0_i32 = arith.constant 0 : i32
    %c0_i32_0 = arith.constant 0 : i32
    return %arg0, %c0_i32, %arg1 : i32, i32, i32
  }
}

</mosaic_0001>

<llo_original>
// kernel: tpu_custom_call.1
$region0: #{tpu_custom_call.1}
  #allocation0 [shape = 'u32[]', space=smem, size = 0x4, offset = 0x4, fixed_abs, tag = 'smem constant byte address 0x4 - core index']
  #allocation1 [shape = 'u32[144,128]{1,0:T(1,128)}', space=vmem, size = 0x12000, scoped, tag = 'internal scratch']
  %s0 = inlined_call_operand.vmem [shape: f32[2,16,128], index: 0, kind: input, shape index: {}]
  %s1 = inlined_call_operand.vmem [shape: f32[64,16], index: 1, kind: input, shape index: {}]
  %s2 = inlined_call_operand.hbm [shape: f32[2,64,128], index: 2, kind: output, shape index: {}]
  %s3 = sld [smem:[#allocation0]]
  $region41: #{tpu_custom_call.1} parent=0
    _
  %s5 = ssub.s32 1, %s3
  %s6 = scalar_select 0, %s5, %s3
  $region1: #{tpu_custom_call.1} parent=0
    #allocation2 [shape = 'u8[65536]{0}', space=vmem, size = 0x10000, scoped, tag = 'output window, operand 0']
    #allocation3 [shape = 's32[2]{0}', space=sflag, size = 0x8, scoped, tag = 'scoped memory for tpu_custom_call.1']
    %7 = vsyncpa [#allocation3], 0
    %s8 = scalar_lea.sflag [#allocation3], 1
    %9 = vsyncpa %s8, 0
    loop: start=0, step=1, limit=4
    $region2: #{tpu_custom_call.1} parent=1 // loop_pre_header
      _
    $region3: #{tpu_custom_call.1} parent=1 // loop_header
      %s11 = sphi 0, %s15
      %p12 = scmp.ge.s32.totalorder %s11, 4
      %s18 = sphi 0, %s30
      %s19 = sphi 0, %s26
      %s20 = sphi 0, %s18
      %s21 = sphi 0, %s19
      %s22 = sphi 0, %s20
      %s23 = sphi 0, %s21
      %s35 = sphi 0, %s37
      %s38 = sphi 0, %s35
      %s39 = sphi 0, %s38
      %s55 = sphi 0, %s39
      %s59 = sphi 0, %s59
      %s61 = sphi 0, %s59
      %s62 = sphi 0, %s61
      %s76 = sphi 0, %s62
      %s84 = sphi 0, %s86
      %s87 = sphi 0, %s84
      %s88 = sphi 0, %s87
      %s104 = sphi 0, %s88
    $region4: #{tpu_custom_call.1} parent=1 // loop_header_branch
      %14 = sbr.rel (%p12) target = $region8
    $region5: #{tpu_custom_call.1} parent=1 // loop_body
      %s16 = ssub.s32 %s11, 1
      %s17 = ssub.s32 %s11, 2
      %s24 = sadd.s32 1, %s19
      %p25 = scmp.ge.s32.totalorder %s24, 1
      %s26 = scalar_select %p25, 0, %s24
      %s27 = sadd.s32 1, %s18
      %s28 = scalar_select %p25, %s27, %s18
      %p29 = scmp.ge.s32.totalorder %s28, 2
      %s30 = scalar_select %p29, 0, %s28
      %s31 = ssub.s32 %s18, %s30
      %s32 = ssub.s32 %s19, %s26
      %s33 = sor.u32 %s31, %s32
      %p34 = scmp.eq.s32.totalorder %s33, 0
      %s36 = sadd.s32 %s35, 1
      %s37 = scalar_select %p34, %s35, %s36
      %p40 = pneg %p34
      %p41 = scmp.eq.s32.totalorder %s11, 1
      %p42 = por %p40, %p41
      %p43 = scmp.ne.s32.totalorder %s35, %s38
      %p44 = scmp.eq.s32.totalorder %s11, 0
      %p45 = por %p43, %p44
      %p46 = scmp.ne.s32.totalorder %s35, %s38
      %p47 = scmp.eq.s32.totalorder %s16, 1
      %p48 = por %p46, %p47
      %p49 = scmp.ne.s32.totalorder %s38, %s39
      %p50 = scmp.eq.s32.totalorder %s16, 0
      %p51 = por %p49, %p50
      %p52 = scmp.ne.s32.totalorder %s38, %s39
      %p53 = scmp.eq.s32.totalorder %s17, 1
      %p54 = por %p52, %p53
      %p56 = scmp.ne.s32.totalorder %s39, %s55
      %p57 = scmp.eq.s32.totalorder %s17, 0
      %p58 = por %p56, %p57
      %s60 = sadd.s32 %s59, 1
      %p63 = scmp.eq.s32.totalorder %s11, 1
      %p64 = scmp.ne.s32.totalorder %s59, %s61
      %p65 = scmp.eq.s32.totalorder %s11, 0
      %p66 = por %p64, %p65
      %p67 = scmp.ne.s32.totalorder %s59, %s61
      %p68 = scmp.eq.s32.totalorder %s16, 1
      %p69 = por %p67, %p68
      %p70 = scmp.ne.s32.totalorder %s61, %s62
      %p71 = scmp.eq.s32.totalorder %s16, 0
      %p72 = por %p70, %p71
      %p73 = scmp.ne.s32.totalorder %s61, %s62
      %p74 = scmp.eq.s32.totalorder %s17, 1
      %p75 = por %p73, %p74
      %p77 = scmp.ne.s32.totalorder %s62, %s76
      %p78 = scmp.eq.s32.totalorder %s17, 0
      %p79 = por %p77, %p78
      %s80 = ssub.s32 %s18, %s30
      %s81 = ssub.s32 %s19, %s26
      %s82 = sor.u32 %s80, %s81
      %p83 = scmp.eq.s32.totalorder %s82, 0
      %s85 = sadd.s32 %s84, 1
      %s86 = scalar_select %p83, %s84, %s85
      %p89 = pneg %p83
      %p90 = scmp.eq.s32.totalorder %s11, 1
      %p91 = por %p89, %p90
      %p92 = scmp.ne.s32.totalorder %s84, %s87
      %p93 = scmp.eq.s32.totalorder %s11, 0
      %p94 = por %p92, %p93
      %p95 = scmp.ne.s32.totalorder %s84, %s87
      %p96 = scmp.eq.s32.totalorder %s16, 1
      %p97 = por %p95, %p96
      %p98 = scmp.ne.s32.totalorder %s87, %s88
      %p99 = scmp.eq.s32.totalorder %s16, 0
      %p100 = por %p98, %p99
      %p101 = scmp.ne.s32.totalorder %s87, %s88
      %p102 = scmp.eq.s32.totalorder %s17, 1
      %p103 = por %p101, %p102
      %p105 = scmp.ne.s32.totalorder %s88, %s104
      %p106 = scmp.eq.s32.totalorder %s17, 0
      %p107 = por %p105, %p106
      %p108 = scmp.le.s32.totalorder 1, %s11
      %p109 = scmp.lt.s32.totalorder %s11, 3
      %p110 = pnand %p108, %p109
      %p111 = pneg %p110
      // Predicated region
      $region9: #{tpu_custom_call.1} parent=5 // pred_check
        _
      $region10: #{tpu_custom_call.1} parent=5 // pred_check_branch
        %113 = sbr.rel (%p110) target = $region12
      $region11: #{tpu_custom_call.1} parent=5 // pred_region
        %s114 = ssub.s32 %s11, 1
        // Predicated region
        $region13: #{tpu_custom_call.1} parent=11 // pred_check
          %p115 = pneg %p72
        $region14: #{tpu_custom_call.1} parent=11 // pred_check_branch
          %117 = sbr.rel (%p115) target = $region16
        $region15: #{tpu_custom_call.1} parent=11 // pred_region
          _
        $region16: #{tpu_custom_call.1} parent=11 // pred_fallthru
          _
      $region12: #{tpu_custom_call.1} parent=5 // pred_fallthru
        _
      %p118 = scmp.lt.s32.totalorder %s11, 2
      // Predicated region
      $region17: #{tpu_custom_call.1} parent=5 // pred_check
        %p119 = pneg %p118
      $region18: #{tpu_custom_call.1} parent=5 // pred_check_branch
        %121 = sbr.rel (%p119) target = $region20
      $region19: #{tpu_custom_call.1} parent=5 // pred_region
        // Predicated region
        $region21: #{tpu_custom_call.1} parent=19 // pred_check
          %p122 = pneg %p45
        $region22: #{tpu_custom_call.1} parent=19 // pred_check_branch
          %124 = sbr.rel (%p122) target = $region24
        $region23: #{tpu_custom_call.1} parent=19 // pred_region
          %p125 = scmp.lt.s32.totalorder %s18, 1
          %s126 = scalar_select %p125, %s18, 1
          %p127 = scmp.lt.s32.totalorder %s19, 0
          %s128 = scalar_select %p127, %s19, 0
          %s129 = smul.addr %s126, 2
          %s130 = sadd.s32 %s128, %s129
          %s131 = smul.addr %s130, 8
          %s132 = scalar_lea.vmem %s0, %s131
        $region24: #{tpu_custom_call.1} parent=19 // pred_fallthru
          _
      $region20: #{tpu_custom_call.1} parent=5 // pred_fallthru
        _
      %p133 = scmp.le.s32.totalorder 1, %s11
      %p134 = scmp.lt.s32.totalorder %s11, 3
      %p135 = pnand %p133, %p134
      %p136 = pneg %p135
      // Predicated region
      $region25: #{tpu_custom_call.1} parent=5 // pred_check
        _
      $region26: #{tpu_custom_call.1} parent=5 // pred_check_branch
        %138 = sbr.rel (%p135) target = $region28
      $region27: #{tpu_custom_call.1} parent=5 // pred_region
        %s139 = ssub.s32 %s11, 1
        %p140 = scmp.lt.s32.totalorder %s20, 1
        %s141 = scalar_select %p140, %s20, 1
        %p142 = scmp.lt.s32.totalorder %s21, 0
        %s143 = scalar_select %p142, %s21, 0
        %s144 = smul.addr %s141, 2
        %s145 = sadd.s32 %s143, %s144
        %s146 = smul.addr %s145, 8
        %s147 = scalar_lea.vmem %s0, %s146
        %p148 = pneg %p51
        %p149 = pneg %p48
        %p150 = pneg %p72
        %p151 = pneg %p69
        %p152 = pneg %p100
        %p153 = pneg %p97
        %s154 = sand.u32 %s87, 1
        %s155 = scalar_lea.sflag [#allocation3], %s154
        %s156 = sand.u32 %s87, 1
        %s157 = smul.addr %s156, 64
        %s158 = scalar_lea.vmem [#allocation2], %s157
        %p159 = scmp.lt.s32.totalorder %s20, 1
        %s160 = scalar_select %p159, %s20, 1
        %p161 = scmp.lt.s32.totalorder %s21, 0
        %s162 = scalar_select %p161, %s21, 0
        %s163 = smul.addr %s160, 2
        %s164 = sadd.s32 %s162, %s163
        %s165 = smul.addr %s164, 8
        %s166 = scalar_lea.vmem %s0, %s165
        %v167 = vld [vmem:[%s1] sm:$0xff]
        %v168 = vld [vmem:[%s1 + $0x8] sm:$0xff]
        %v169 = vld [vmem:[%s1 + $0x10] sm:$0xff]
        %v170 = vld [vmem:[%s1 + $0x18] sm:$0xff]
        %v171 = vld [vmem:[%s1 + $0x20] sm:$0xff]
        %v172 = vld [vmem:[%s1 + $0x28] sm:$0xff]
        %v173 = vld [vmem:[%s1 + $0x30] sm:$0xff]
        %v174 = vld [vmem:[%s1 + $0x38] sm:$0xff]
        %v175 = vld [vmem:[%s166] sm:$0xff]
        %v176 = vld [vmem:[%s166 + $0x8] sm:$0xff]
        %vm177 = vcmask 130048
        %v179 = vsel %vm177, %v167, 0
        %v182 = vsel %vm177, %v168, 0
        %v185 = vsel %vm177, %v169, 0
        %v188 = vsel %vm177, %v170, 0
        %v191 = vsel %vm177, %v171, 0
        %v194 = vsel %vm177, %v172, 0
        %v197 = vsel %vm177, %v173, 0
        %v200 = vsel %vm177, %v174, 0
        %202 = vmatprep.subr.mxu0 0.0
        %203 = vmatpush1.msra.mxu0 %v175
        %204 = vmatprep.subr.mxu0 0.0
        %205 = vmatpush1.msra.mxu0 %v176
        %206 = vmatprep.subr.mxu0 0.0
        %207 = vmatpush1.msra.mxu0 0.0
        %208 = vmatprep.subr.mxu0 0.0
        %209 = vmatpush1.msra.mxu0 0.0
        %210 = vmatprep.subr.mxu0 0.0
        %211 = vmatpush1.msra.mxu0 0.0
        %212 = vmatprep.subr.mxu0 0.0
        %213 = vmatpush1.msra.mxu0 0.0
        %214 = vmatprep.subr.mxu0 0.0
        %215 = vmatpush1.msra.mxu0 0.0
        %216 = vmatprep.subr.mxu0 0.0
        %217 = vmatpush1.msra.mxu0 0.0
        %218 = vmatprep.subr.mxu0 0.0
        %219 = vmatpush1.msra.mxu0 0.0
        %220 = vmatprep.subr.mxu0 0.0
        %221 = vmatpush1.msra.mxu0 0.0
        %222 = vmatprep.subr.mxu0 0.0
        %223 = vmatpush1.msra.mxu0 0.0
        %224 = vmatprep.subr.mxu0 0.0
        %225 = vmatpush1.msra.mxu0 0.0
        %226 = vmatprep.subr.mxu0 0.0
        %227 = vmatpush1.msra.mxu0 0.0
        %228 = vmatprep.subr.mxu0 0.0
        %229 = vmatpush1.msra.mxu0 0.0
        %230 = vmatprep.subr.mxu0 0.0
        %231 = vmatpush1.msra.mxu0 0.0
        %232 = vmatprep.subr.mxu0 0.0
        %233 = vmatpush1.msra.mxu0 0.0
        %234 = vmatprep.subr.mxu0 0.0
        %235 = vmatpush1.msra.mxu0 0.0
        %236 = vmatprep.subr.mxu0 0.0
        %237 = vmatpush1.msra.mxu0 0.0
        %238 = vmatprep.subr.mxu0 0.0
        %239 = vmatpush1.msra.mxu0 0.0
        %240 = vmatprep.subr.mxu0 0.0
        %241 = vmatpush1.msra.mxu0 0.0
        %242 = vmatprep.subr.mxu0 0.0
        %243 = vmatpush1.msra.mxu0 0.0
        %244 = vmatprep.subr.mxu0 0.0
        %245 = vmatpush1.msra.mxu0 0.0
        %246 = vmatprep.subr.mxu0 0.0
        %247 = vmatpush1.msra.mxu0 0.0
        %248 = vmatprep.subr.mxu0 0.0
        %249 = vmatpush1.msra.mxu0 0.0
        %250 = vmatprep.subr.mxu0 0.0
        %251 = vmatpush1.msra.mxu0 0.0
        %252 = vmatprep.subr.mxu0 0.0
        %253 = vmatpush1.msra.mxu0 0.0
        %254 = vmatprep.subr.mxu0 0.0
        %255 = vmatpush1.msra.mxu0 0.0
        %256 = vmatprep.subr.mxu0 0.0
        %257 = vmatpush1.msra.mxu0 0.0
        %258 = vmatprep.subr.mxu0 0.0
        %259 = vmatpush1.msra.mxu0 0.0
        %260 = vmatprep.subr.mxu0 0.0
        %261 = vmatpush1.msra.mxu0 0.0
        %262 = vmatprep.subr.mxu0 0.0
        %263 = vmatpush1.msra.mxu0 0.0
        %264 = vmatprep.subr.mxu0 0.0
        %265 = vmatpush1.msra.mxu0 0.0
        %266 = vmatprep.mubr.f32.mxu0 0.0
        %267 = vmatmul.mubr.f32.gmra.mrb[0].mxu0 %v179
        %v268 = vpop.f32.mrb[0].mxu0
        %v269 = vadd.f32 0.0, %v268
        %v270 = vpop.f32.mrb[0].mxu0
        %271 = vmatprep.mubr.f32.mxu0 0.0
        %272 = vmatmul.mubr.f32.gmra.mrb[0].mxu0 %v182
        %v273 = vpop.f32.mrb[0].mxu0
        %v274 = vadd.f32 0.0, %v273
        %v275 = vpop.f32.mrb[0].mxu0
        %276 = vmatprep.mubr.f32.mxu0 0.0
        %277 = vmatmul.mubr.f32.gmra.mrb[0].mxu0 %v185
        %v278 = vpop.f32.mrb[0].mxu0
        %v279 = vadd.f32 0.0, %v278
        %v280 = vpop.f32.mrb[0].mxu0
        %281 = vmatprep.mubr.f32.mxu0 0.0
        %282 = vmatmul.mubr.f32.gmra.mrb[0].mxu0 %v188
        %v283 = vpop.f32.mrb[0].mxu0
        %v284 = vadd.f32 0.0, %v283
        %v285 = vpop.f32.mrb[0].mxu0
        %286 = vmatprep.mubr.f32.mxu0 0.0
        %287 = vmatmul.mubr.f32.gmra.mrb[0].mxu0 %v191
        %v288 = vpop.f32.mrb[0].mxu0
        %v289 = vadd.f32 0.0, %v288
        %v290 = vpop.f32.mrb[0].mxu0
        %291 = vmatprep.mubr.f32.mxu0 0.0
        %292 = vmatmul.mubr.f32.gmra.mrb[0].mxu0 %v194
        %v293 = vpop.f32.mrb[0].mxu0
        %v294 = vadd.f32 0.0, %v293
        %v295 = vpop.f32.mrb[0].mxu0
        %296 = vmatprep.mubr.f32.mxu0 0.0
        %297 = vmatmul.mubr.f32.gmra.mrb[0].mxu0 %v197
        %v298 = vpop.f32.mrb[0].mxu0
        %v299 = vadd.f32 0.0, %v298
        %v300 = vpop.f32.mrb[0].mxu0
        %301 = vmatprep.mubr.f32.mxu0 0.0
        %302 = vmatmul.mubr.f32.gmra.mrb[0].mxu0 %v200
        %v303 = vpop.f32.mrb[0].mxu0
        %v304 = vadd.f32 0.0, %v303
        %v305 = vpop.f32.mrb[0].mxu0
        %306 = vdwg.mxu0
        %v307 = vmax.f32 %v269, 0.0
        %v308 = vmax.f32 %v274, 0.0
        %v309 = vmax.f32 %v279, 0.0
        %v310 = vmax.f32 %v284, 0.0
        %v311 = vmax.f32 %v289, 0.0
        %v312 = vmax.f32 %v294, 0.0
        %v313 = vmax.f32 %v299, 0.0
        %v314 = vmax.f32 %v304, 0.0
        %315 = vst [vmem:[%s158] sm:$0xff] %v307
        %316 = vst [vmem:[%s158 + $0x8] sm:$0xff] %v308
        %317 = vst [vmem:[%s158 + $0x10] sm:$0xff] %v309
        %318 = vst [vmem:[%s158 + $0x18] sm:$0xff] %v310
        %319 = vst [vmem:[%s158 + $0x20] sm:$0xff] %v311
        %320 = vst [vmem:[%s158 + $0x28] sm:$0xff] %v312
        %321 = vst [vmem:[%s158 + $0x30] sm:$0xff] %v313
        %322 = vst [vmem:[%s158 + $0x38] sm:$0xff] %v314
        %s323 = sand.u32 %s87, 1
        %s324 = scalar_lea.sflag [#allocation3], %s323
        %s325 = sand.u32 %s87, 1
        %s326 = smul.addr %s325, 64
        %s327 = scalar_lea.vmem [#allocation2], %s326
        // Predicated region
        $region29: #{tpu_custom_call.1} parent=27 // pred_check
          %p328 = pneg %p97
        $region30: #{tpu_custom_call.1} parent=27 // pred_check_branch
          %330 = sbr.rel (%p328) target = $region32
        $region31: #{tpu_custom_call.1} parent=27 // pred_region
          %s332 = ssub.s32 1024, 1024
          %333 = vsyncadd %s324, %s332
          %s334 = smul.addr %s20, 8
          %s335 = sadd.s32 %s21, %s334
          %s336 = smul.addr %s335, 128
          %s337 = scalar_lea.hbm %s2, %s336
          %s338 = sshll.u32 %s327, 4
          %s339 = int_to_ptr.vmem [resolvable:$true] %s338
          %344 = dma.vmem_to_hbm [thread:$0]  %s339, 1024, %s337, %s324, 128, 128, 8
        $region32: #{tpu_custom_call.1} parent=27 // pred_fallthru
          _
      $region28: #{tpu_custom_call.1} parent=5 // pred_fallthru
        _
      %p345 = scmp.le.s32.totalorder 2, %s11
      // Predicated region
      $region33: #{tpu_custom_call.1} parent=5 // pred_check
        %p346 = pneg %p345
      $region34: #{tpu_custom_call.1} parent=5 // pred_check_branch
        %348 = sbr.rel (%p346) target = $region36
      $region35: #{tpu_custom_call.1} parent=5 // pred_region
        %s349 = ssub.s32 %s11, 2
        // Predicated region
        $region37: #{tpu_custom_call.1} parent=35 // pred_check
          %p350 = pneg %p103
        $region38: #{tpu_custom_call.1} parent=35 // pred_check_branch
          %352 = sbr.rel (%p350) target = $region40
        $region39: #{tpu_custom_call.1} parent=35 // pred_region
          %s353 = sand.u32 %s88, 1
          %s354 = scalar_lea.sflag [#allocation3], %s353
          %s355 = sand.u32 %s88, 1
          %s356 = smul.addr %s355, 64
          %s357 = scalar_lea.vmem [#allocation2], %s356
          %358 = dma.done %s354, 1024
        $region40: #{tpu_custom_call.1} parent=35 // pred_fallthru
          _
      $region36: #{tpu_custom_call.1} parent=5 // pred_fallthru
        _
    $region6: #{tpu_custom_call.1} parent=1 // loop_footer
      %s15 = sadd.s32 1, %s11
    $region7: #{tpu_custom_call.1} parent=1 // loop_footer_branch
      %10 = sbr.rel target = $region3
    $region8: #{tpu_custom_call.1} parent=1 // loop_exit
      _
    %359 = vsyncpa [#allocation3], 1
    %s360 = scalar_lea.sflag [#allocation3], 1
    %361 = vsyncpa %s360, 1

</llo_original>
